<compile_context>
chip_gen: v5e
topology: v5e:2x2
jax: 0.10.0
libtpu: 0.0.40
codegen_flags: <defaults>
</compile_context>

<pallas_src>
import functools

import jax
import jax.numpy as jnp
from jax.experimental import pallas as pl
from jax.experimental.pallas import tpu as pltpu


def _round_down(x, m):
    return (x // m) * m


def _hinge_body(x_ref, t_ref, m_ref, o_ref, *, margin, rows, cols,
                block_b, block_n, split_cols, steps, pad_ind):
    g = pl.program_id(0)          # parallel group (row block, or column group)
    j = pl.program_id(1)          # sequential accumulation step

    @pl.when(j == 0)
    def _init():
        o_ref[...] = jnp.zeros_like(o_ref)

    # Cast to f32 right after load (free VPU work; required on v5e for bf16).
    x = x_ref[...].astype(jnp.float32)
    t = t_ref[...].astype(jnp.float32)
    loss = jnp.maximum(jnp.float32(margin) - (2.0 * t - 1.0) * x, 0.0)

    if m_ref is not None:
        # int8 0/1 mask; `where` (not multiply) matches torch masked_fill exactly.
        loss = jnp.where(m_ref[...] != 0, loss, 0.0)

    # Static trace-time flags: edge masking / pad_ind compare only when needed.
    if (cols % block_n != 0) or (pad_ind is not None):
        ci = g * steps + j if split_cols else j
        col_ids = ci * block_n + jax.lax.broadcasted_iota(jnp.int32, loss.shape, 1)
        if pad_ind is not None:
            loss = jnp.where(col_ids == pad_ind, 0.0, loss)
        if cols % block_n != 0:
            loss = jnp.where(col_ids < cols, loss, 0.0)   # partial last column block
    if rows % block_b != 0:
        ri = 0 if split_cols else g
        row_ids = ri * block_b + jax.lax.broadcasted_iota(jnp.int32, loss.shape, 0)
        loss = jnp.where(row_ids < rows, loss, 0.0)       # partial last row block

    # Fold the whole tile to a (1, block_n) partial sum and accumulate into the
    # resident output block (no block-sized scratch, no finalize add-chain).
    psum = jnp.sum(loss, axis=0, keepdims=True)
    o_ref[...] += psum.reshape(o_ref.shape)


def _hinge_kernel(x_ref, t_ref, o_ref, **kw):
    _hinge_body(x_ref, t_ref, None, o_ref, **kw)


def _hinge_kernel_masked(x_ref, t_ref, m_ref, o_ref, **kw):
    _hinge_body(x_ref, t_ref, m_ref, o_ref, **kw)


@functools.partial(
    jax.jit,
    static_argnames=("margin", "reduction", "pad_ind", "max_block_b", "max_block_n"),
)
def hinge_loss(inp, target, mask=None, *, margin=1.0, reduction="mean",
               pad_ind=None, max_block_b=256, max_block_n=2048):
    """Mean/sum-reduced hinge loss computed in a Pallas TPU kernel."""
    assert inp.ndim == 2 and inp.shape == target.shape
    if mask is not None:
        assert mask.shape == inp.shape
    B, N = inp.shape

    # --- block sizing ------------------------------------------------------
    # Full-extent blocks are exempt from the (sublane, lane) divisibility rule;
    # otherwise keep the sublane dim a multiple of 32 (covers f32/bf16 inputs
    # and the int8 mask) and the lane dim a multiple of 128.
    block_b = B if B <= max_block_b else max(32, _round_down(max_block_b, 32))
    block_n = N if N <= max_block_n else max(128, _round_down(max_block_n, 128))
    row_blocks = pl.cdiv(B, block_b)
    col_blocks = pl.cdiv(N, block_n)

    # --- grid: (parallel groups, sequential accumulation steps) ------------
    # If there is only one row block, split the column blocks into two parallel
    # groups so both v7x TensorCores get work (harmless on v5e/v6e).
    if row_blocks == 1 and col_blocks >= 2 and col_blocks % 2 == 0:
        split_cols, num_groups, steps = True, 2, col_blocks // 2
    else:
        split_cols, num_groups, steps = False, row_blocks, col_blocks

    if split_cols:
        def data_map(g, j): return (0, g * steps + j)
    else:
        def data_map(g, j): return (g, j)

    if pad_ind is not None:
        pad_ind = pad_ind % N            # allow negative indices like torch

    kernel_kw = dict(margin=float(margin), rows=B, cols=N,
                     block_b=block_b, block_n=block_n,
                     split_cols=split_cols, steps=steps, pad_ind=pad_ind)

    data_spec = pl.BlockSpec((block_b, block_n), data_map)
    in_specs = [data_spec, data_spec]
    operands = [inp, target]             # native dtypes, no host upcast
    streamed = inp.size * inp.dtype.itemsize + target.size * target.dtype.itemsize
    mask_bytes = 0
    if mask is not None:
        m8 = mask.astype(jnp.int8)       # 1 B/elem on the wire (bool->i8 is cheap)
        in_specs.append(data_spec)
        operands.append(m8)
        mask_bytes = 1
        streamed += m8.size
        kernel = functools.partial(_hinge_kernel_masked, **kernel_kw)
    else:
        kernel = functools.partial(_hinge_kernel, **kernel_kw)

    out_shape = jax.ShapeDtypeStruct((num_groups, 1, block_n), jnp.float32)
    out_spec = pl.BlockSpec((1, 1, block_n), lambda g, j: (g, 0, 0))

    # Double-buffered inputs + resident output + slack; generous but bounded so
    # it fits every generation (v5e/v6e: 128 MiB physical, v7x: 64 MiB per TC).
    in_block_bytes = block_b * block_n * (
        inp.dtype.itemsize + target.dtype.itemsize + mask_bytes)
    need = 2 * in_block_bytes + 2 * block_n * 4 + (2 << 20)
    vmem_limit = int(min(max(2 * need, 32 << 20), 48 << 20))

    partials = pl.pallas_call(
        kernel,
        out_shape=out_shape,
        grid=(num_groups, steps),
        in_specs=in_specs,
        out_specs=out_spec,
        compiler_params=pltpu.CompilerParams(
            dimension_semantics=("parallel", "arbitrary"),
            vmem_limit_bytes=vmem_limit),
        cost_estimate=pl.CostEstimate(
            flops=6 * B * N, transcendentals=0,
            bytes_accessed=streamed + num_groups * block_n * 4),
    )(*operands)

    total = jnp.sum(partials)
    if reduction == "mean":
        return total / jnp.float32(B * N)
    if reduction == "sum":
        return total
    # TODO(synk): 'none' / 'custom' reductions need elementwise / per-row
    # outputs; only 'mean' and 'sum' are implemented in the Pallas path.
    raise NotImplementedError(f"reduction={reduction!r} not supported")


def _reference(inp, target, mask=None, margin=1.0, reduction="mean", pad_ind=None):
    """Pure-JAX reference mirroring the PyTorch HingeLoss forward."""
    loss = jnp.maximum(margin - (2.0 * target - 1.0) * inp, 0.0)
    if pad_ind is not None:
        loss = loss.at[:, pad_ind].set(0.0)
    if mask is not None:
        loss = jnp.where(mask, loss, 0.0)
    return jnp.mean(loss) if reduction == "mean" else jnp.sum(loss)


if __name__ == "__main__":
    key = jax.random.PRNGKey(0)
    ks = jax.random.split(key, 6)

    # 1) batch x output logits + 0/1 targets + bool mask (single-block path)
    B, N = 8, 256
    x = jax.random.normal(ks[0], (B, N), dtype=jnp.float32)
    t = (jax.random.uniform(ks[1], (B, N)) < 0.1).astype(jnp.float32)
    m = jax.random.uniform(ks[2], (B, N)) < 0.9
    out = hinge_loss(x, t, m)
    jax.block_until_ready(out)
    assert jnp.allclose(out, _reference(x, t, m), atol=1e-5, rtol=1e-5), out

    # 2) mask=None path (2-input kernel, no synthetic ones stream)
    out2 = hinge_loss(x, t)
    jax.block_until_ready(out2)
    assert jnp.allclose(out2, _reference(x, t), atol=1e-5, rtol=1e-5), out2

    # 3) non-(8,128)-aligned shape + pad_ind (no host padding, no synthetic mask)
    B2, N2 = 5, 200
    x2 = jax.random.normal(ks[3], (B2, N2), dtype=jnp.float32)
    t2 = (jax.random.uniform(ks[4], (B2, N2)) < 0.2).astype(jnp.float32)
    out3 = hinge_loss(x2, t2, pad_ind=3)
    jax.block_until_ready(out3)
    assert jnp.allclose(out3, _reference(x2, t2, pad_ind=3),
                        atol=1e-5, rtol=1e-5), out3

    # 4) multi-block grid with partial edge blocks in BOTH axes + mask + 'sum'
    B3, N3 = 40, 448
    x3 = jax.random.normal(ks[5], (B3, N3), dtype=jnp.float32)
    t3 = (jax.random.uniform(ks[0], (B3, N3)) < 0.1).astype(jnp.float32)
    m3 = jax.random.uniform(ks[1], (B3, N3)) < 0.5
    out4 = hinge_loss(x3, t3, m3, max_block_b=32, max_block_n=128, reduction="sum")
    jax.block_until_ready(out4)
    ref4 = _reference(x3, t3, m3, reduction="sum")
    assert jnp.allclose(out4, ref4, atol=1e-2, rtol=1e-4), (out4, ref4)

    # 5) column-split path: single row block, even number of column blocks ->
    #    two parallel groups (exercises the v7x dual-TensorCore layout)
    B4, N4 = 8, 512
    x4 = jax.random.normal(ks[2], (B4, N4), dtype=jnp.float32)
    t4 = (jax.random.uniform(ks[3], (B4, N4)) < 0.1).astype(jnp.float32)
    out5 = hinge_loss(x4, t4, max_block_n=128)
    jax.block_until_ready(out5)
    assert jnp.allclose(out5, _reference(x4, t4), atol=1e-5, rtol=1e-5), out5

    print("KERNEL_OK")
</pallas_src>

<mosaic_0001>
module attributes {stable_mosaic.version = 11 : i64} {
  func.func @_hinge_kernel_masked(%arg0: i32, %arg1: i32, %arg2: memref<8x256xf32, #tpu.memory_space<vmem>>, %arg3: memref<8x256xf32, #tpu.memory_space<vmem>>, %arg4: memref<8x256xi8, #tpu.memory_space<vmem>>, %arg5: memref<1x1x256xf32, #tpu.memory_space<vmem>>) attributes {dimension_semantics = [#tpu.dimension_semantics<parallel>, #tpu.dimension_semantics<arbitrary>], iteration_bounds = array<i64: 1, 1>, scalar_prefetch = 0 : i64, scratch_operands = 0 : i64, tpu.core_type = #tpu.core_type<tc>, window_params = [{transform_indices = @transform_0, window_bounds = array<i64: 8, 256>}, {transform_indices = @transform_1, window_bounds = array<i64: 8, 256>}, {transform_indices = @transform_2, window_bounds = array<i64: 8, 256>}, {transform_indices = @transform_3, window_bounds = array<i64: 1, 1, 256>}]} {
    %c0_i32 = arith.constant 0 : i32
    %0 = arith.cmpi eq, %arg1, %c0_i32 : i32
    %1 = arith.extui %0 : i1 to i32
    %c0_i32_0 = arith.constant 0 : i32
    %2 = arith.cmpi ne, %1, %c0_i32_0 : i32
    scf.if %2 {
      %cst_17 = arith.constant 0.000000e+00 : f32
      %25 = vector.broadcast %cst_17 : f32 to vector<1x1x256xf32>
      %c0_18 = arith.constant 0 : index
      %c0_19 = arith.constant 0 : index
      %c0_20 = arith.constant 0 : index
      %26 = vector.load %arg5[%c0_18, %c0_19, %c0_20] : memref<1x1x256xf32, #tpu.memory_space<vmem>>, vector<1x1x256xf32>
      tpu.vector_store %arg5[%c0_18, %c0_19, %c0_20], %25 {strides = array<i32>} : memref<1x1x256xf32, #tpu.memory_space<vmem>>, vector<1x1x256xf32>,
    } else {
    }
    %c0 = arith.constant 0 : index
    %c0_1 = arith.constant 0 : index
    %3 = vector.load %arg2[%c0, %c0_1] : memref<8x256xf32, #tpu.memory_space<vmem>>, vector<8x256xf32>
    %c0_2 = arith.constant 0 : index
    %c0_3 = arith.constant 0 : index
    %4 = vector.load %arg3[%c0_2, %c0_3] : memref<8x256xf32, #tpu.memory_space<vmem>>, vector<8x256xf32>
    %cst = arith.constant 2.000000e+00 : f32
    %5 = vector.broadcast %cst : f32 to vector<8x256xf32>
    %6 = arith.mulf %5, %4 : vector<8x256xf32>
    %cst_4 = arith.constant 1.000000e+00 : f32
    %7 = vector.broadcast %cst_4 : f32 to vector<8x256xf32>
    %8 = arith.subf %6, %7 : vector<8x256xf32>
    %9 = arith.mulf %8, %3 : vector<8x256xf32>
    %cst_5 = arith.constant 1.000000e+00 : f32
    %10 = vector.broadcast %cst_5 : f32 to vector<8x256xf32>
    %11 = arith.subf %10, %9 : vector<8x256xf32>
    %cst_6 = arith.constant 0.000000e+00 : f32
    %12 = vector.broadcast %cst_6 : f32 to vector<8x256xf32>
    %13 = arith.maximumf %11, %12 : vector<8x256xf32>
    %c0_7 = arith.constant 0 : index
    %c0_8 = arith.constant 0 : index
    %14 = vector.load %arg4[%c0_7, %c0_8] : memref<8x256xi8, #tpu.memory_space<vmem>>, vector<8x256xi8>
    %c0_i8 = arith.constant 0 : i8
    %15 = vector.broadcast %c0_i8 : i8 to vector<8x256xi8>
    %16 = arith.cmpi ne, %14, %15 : vector<8x256xi8>
    %cst_9 = arith.constant 0.000000e+00 : f32
    %17 = vector.broadcast %cst_9 : f32 to vector<8x256xf32>
    %18 = arith.select %16, %13, %17 : vector<8x256xi1>, vector<8x256xf32>
    %cst_10 = arith.constant dense<0.000000e+00> : vector<256xf32>
    %19 = vector.multi_reduction <add>, %18, %cst_10 [0] : vector<8x256xf32> to vector<256xf32>
    %20 = vector.shape_cast %19 : vector<256xf32> to vector<1x256xf32>
    %c0_11 = arith.constant 0 : index
    %c0_12 = arith.constant 0 : index
    %c0_13 = arith.constant 0 : index
    %21 = vector.load %arg5[%c0_11, %c0_12, %c0_13] : memref<1x1x256xf32, #tpu.memory_space<vmem>>, vector<1x1x256xf32>
    %22 = vector.shape_cast %20 : vector<1x256xf32> to vector<1x1x256xf32>
    %23 = arith.addf %21, %22 : vector<1x1x256xf32>
    %c0_14 = arith.constant 0 : index
    %c0_15 = arith.constant 0 : index
    %c0_16 = arith.constant 0 : index
    %24 = vector.load %arg5[%c0_14, %c0_15, %c0_16] : memref<1x1x256xf32, #tpu.memory_space<vmem>>, vector<1x1x256xf32>
    tpu.vector_store %arg5[%c0_14, %c0_15, %c0_16], %23 {strides = array<i32>} : memref<1x1x256xf32, #tpu.memory_space<vmem>>, vector<1x1x256xf32>,
    return
  }
  func.func @transform_0(%arg0: i32, %arg1: i32) -> (i32, i32) {
    %c0_i32 = arith.constant 0 : i32
    return %arg0, %arg1 : i32, i32
  }
  func.func @transform_1(%arg0: i32, %arg1: i32) -> (i32, i32) {
    %c0_i32 = arith.constant 0 : i32
    return %arg0, %arg1 : i32, i32
  }
  func.func @transform_2(%arg0: i32, %arg1: i32) -> (i32, i32) {
    %c0_i32 = arith.constant 0 : i32
    return %arg0, %arg1 : i32, i32
  }
  func.func @transform_3(%arg0: i32, %arg1: i32) -> (i32, i32, i32) {
    %c0_i32 = arith.constant 0 : i32
    %c0_i32_0 = arith.constant 0 : i32
    %c0_i32_1 = arith.constant 0 : i32
    return %arg0, %c0_i32, %c0_i32_0 : i32, i32, i32
  }
}

</mosaic_0001>

<llo_original>
// kernel: hinge_loss.1
$region0: #{hinge_loss.1}
  #allocation0 [shape = 'u32[]', space=smem, size = 0x4, offset = 0x4, fixed_abs, tag = 'smem constant byte address 0x4 - core index']
  #allocation1 [shape = 'u32[72,128]{1,0:T(1,128)}', space=vmem, size = 0x9000, scoped, tag = 'internal scratch']
  %s0 = inlined_call_operand.hbm [shape: f32[8,256], index: 0, kind: input, shape index: {}]
  %s1 = inlined_call_operand.hbm [shape: f32[8,256], index: 1, kind: input, shape index: {}]
  %s2 = inlined_call_operand.vmem [shape: s8[8,256], index: 2, kind: input, shape index: {}]
  %s3 = inlined_call_operand.vmem [shape: f32[1,1,256], index: 3, kind: output, shape index: {}]
  %s4 = sld [smem:[#allocation0]]
  $region34: #{hinge_loss.1} parent=0
    _
  %s6 = ssub.s32 1, %s4
  %s7 = scalar_select 0, %s6, %s4
  $region1: #{hinge_loss.1} parent=0
    #allocation2 [shape = 'u8[8192]{0}', space=vmem, size = 0x2000, scoped, tag = 'input window, operand 0, single buffered']
    #allocation3 [shape = 's32[1]{0}', space=sflag, size = 0x4, scoped, tag = 'scoped memory for hinge_loss.1']
    #allocation4 [shape = 'u8[8192]{0}', space=vmem, size = 0x2000, scoped, tag = 'input window, operand 1, single buffered']
    #allocation5 [shape = 's32[1]{0}', space=sflag, size = 0x4, scoped, tag = 'scoped memory for hinge_loss.1']
    %8 = vsyncpa [#allocation3], 0
    %9 = vsyncpa [#allocation5], 0
    // Predicated region
    $region2: #{hinge_loss.1} parent=1 // pred_check
      _
    $region3: #{hinge_loss.1} parent=1 // pred_check_branch
      %11 = sbr.rel (0) target = $region5
    $region4: #{hinge_loss.1} parent=1 // pred_region
      %13 = vsyncadd [#allocation3], 0
      %s15 = sshll.u32 %s0, 4
      %s16 = int_to_ptr.hbm [resolvable:$true] %s15
      %s17 = sshll.u32 [#allocation2], 4
      %s18 = int_to_ptr.vmem [resolvable:$true] %s17
      %20 = dma.hbm_to_vmem [thread:$0]  %s16, 256, %s18, [#allocation3]
    $region5: #{hinge_loss.1} parent=1 // pred_fallthru
      _
    // Predicated region
    $region6: #{hinge_loss.1} parent=1 // pred_check
      _
    $region7: #{hinge_loss.1} parent=1 // pred_check_branch
      %22 = sbr.rel (0) target = $region9
    $region8: #{hinge_loss.1} parent=1 // pred_region
      %24 = vsyncadd [#allocation5], 0
      %s26 = sshll.u32 %s1, 4
      %s27 = int_to_ptr.hbm [resolvable:$true] %s26
      %s28 = sshll.u32 [#allocation4], 4
      %s29 = int_to_ptr.vmem [resolvable:$true] %s28
      %31 = dma.hbm_to_vmem [thread:$0]  %s27, 256, %s29, [#allocation5]
    $region9: #{hinge_loss.1} parent=1 // pred_fallthru
      _
    // Predicated region
    $region10: #{hinge_loss.1} parent=1 // pred_check
      _
    $region11: #{hinge_loss.1} parent=1 // pred_check_branch
      %33 = sbr.rel (0) target = $region13
    $region12: #{hinge_loss.1} parent=1 // pred_region
      _
    $region13: #{hinge_loss.1} parent=1 // pred_fallthru
      _
    // Predicated region
    $region14: #{hinge_loss.1} parent=1 // pred_check
      _
    $region15: #{hinge_loss.1} parent=1 // pred_check_branch
      %35 = sbr.rel (0) target = $region17
    $region16: #{hinge_loss.1} parent=1 // pred_region
      %37 = dma.done [#allocation3], 256
    $region17: #{hinge_loss.1} parent=1 // pred_fallthru
      _
    // Predicated region
    $region18: #{hinge_loss.1} parent=1 // pred_check
      _
    $region19: #{hinge_loss.1} parent=1 // pred_check_branch
      %39 = sbr.rel (0) target = $region21
    $region20: #{hinge_loss.1} parent=1 // pred_region
      %41 = dma.done [#allocation5], 256
    $region21: #{hinge_loss.1} parent=1 // pred_fallthru
      _
    %p44 = scmp.eq.s32.totalorder 0, 0
    // Predicated region
    $region22: #{hinge_loss.1} parent=1 // pred_check
      %p45 = pneg %p44
    $region23: #{hinge_loss.1} parent=1 // pred_check_branch
      %47 = sbr.rel (%p45) target = $region25
    $region24: #{hinge_loss.1} parent=1 // pred_region
      %v48 = vlaneseq
      %vm49 = vcmp.ge.s32.totalorder %v48, 0
      %vm50 = vcmp.lt.s32.totalorder %v48, 256
      %vm51 = vmand %vm49, %vm50
      %52 = vst.msk [vmem:[%s3] sm:$0x3] %vm51, 0.0
    $region25: #{hinge_loss.1} parent=1 // pred_fallthru
      _
    %v53 = vld [vmem:[#allocation2] sm:$0xff]
    %v54 = vld [vmem:[#allocation2 + $0x8] sm:$0xff]
    %v55 = vld [vmem:[#allocation4] sm:$0xff]
    %v56 = vld [vmem:[#allocation4 + $0x8] sm:$0xff]
    %v57 = vmul.f32 %v55, 2.0
    %v58 = vmul.f32 %v56, 2.0
    %v59 = vsub.f32 %v57, 1.0
    %v60 = vsub.f32 %v58, 1.0
    %v61 = vmul.f32 %v59, %v53
    %v62 = vmul.f32 %v60, %v54
    %v63 = vsub.f32 1.0, %v61
    %v64 = vsub.f32 1.0, %v62
    %v65 = vmax.f32 %v63, 0.0
    %v66 = vmax.f32 %v64, 0.0
    %v67 = vld [vmem:[%s2] sm:$0xf]
    %vm68 = vnez %v67
    %v69 = vsel %vm68, 16843009, 0
    %v70 = vunpack.c.0.s8 %v69
    %v71 = vunpack.c.1.s8 %v69
    %vm72 = vcmp.ne.s32.totalorder %v70, 0
    %vm73 = vcmp.ne.s32.totalorder %v71, 0
    %v74 = vsel %vm72, %v65, 0.0
    %v75 = vsel %vm73, %v66, 0.0
    %v76 = vrot.slane %v74, 4
    %v77 = vadd.f32 %v74, %v76
    %v78 = vrot.slane %v77, 2
    %v79 = vadd.f32 %v77, %v78
    %v80 = vrot.slane %v79, 1
    %v81 = vadd.f32 %v79, %v80
    %v82 = vrot.slane %v75, 4
    %v83 = vadd.f32 %v75, %v82
    %v84 = vrot.slane %v83, 2
    %v85 = vadd.f32 %v83, %v84
    %v86 = vrot.slane %v85, 1
    %v87 = vadd.f32 %v85, %v86
    %v88 = vld [vmem:[%s3] sm:$0x3]
    %v91 = vrot.slane %v87, 7
    %vm92 = vcmask 1040384
    %v93 = vsel %vm92, %v81, %v91
    %v95 = vadd.f32 %v88, %v93
    %v96 = vlaneseq
    %vm97 = vcmp.ge.s32.totalorder %v96, 0
    %vm98 = vcmp.lt.s32.totalorder %v96, 256
    %vm99 = vmand %vm97, %vm98
    %100 = vst.msk [vmem:[%s3] sm:$0x3] %vm99, %v95
    // Predicated region
    $region26: #{hinge_loss.1} parent=1 // pred_check
      _
    $region27: #{hinge_loss.1} parent=1 // pred_check_branch
      %102 = sbr.rel (0) target = $region29
    $region28: #{hinge_loss.1} parent=1 // pred_region
      _
    $region29: #{hinge_loss.1} parent=1 // pred_fallthru
      _
    // Predicated region
    $region30: #{hinge_loss.1} parent=1 // pred_check
      _
    $region31: #{hinge_loss.1} parent=1 // pred_check_branch
      %104 = sbr.rel (0) target = $region33
    $region32: #{hinge_loss.1} parent=1 // pred_region
      _
    $region33: #{hinge_loss.1} parent=1 // pred_fallthru
      _
    %105 = vsyncpa [#allocation3], 1
    %106 = vsyncpa [#allocation5], 1

</llo_original>
